<compile_context>
chip_gen: v5e
topology: v5e:2x2
jax: 0.10.0
libtpu: 0.0.40
codegen_flags: <defaults>
</compile_context>

<pallas_src>
import functools

import jax
import jax.numpy as jnp
from jax import lax
from jax.experimental import pallas as pl
from jax.experimental.pallas import tpu as pltpu


def _round_up(v, m):
    return ((v + m - 1) // m) * m


def _cdiv(a, b):
    return -(-a // b)


def _club_kernel(x_ref, labels_ref, w1_ref, b1_ref, w2_ref, b2_ref,
                 diag_out, colsum_out, counts_out,
                 h_scratch, diag_acc, colsum_acc, counts_acc,
                 *, batch, has_pad):
    c = pl.program_id(0)        # "parallel" batch super-chunk (megacore)
    i = pl.program_id(1)        # batch tile within chunk (reduction axis)
    jj = pl.program_id(2)       # label tile
    n_i = pl.num_programs(1)

    tb = x_ref.shape[0]
    tile_l = w2_ref.shape[1]

    # Zero the per-chunk accumulators at the first step of each chunk.
    @pl.when(jnp.logical_and(i == 0, jj == 0))
    def _init():
        diag_acc[...] = jnp.zeros_like(diag_acc)
        colsum_acc[...] = jnp.zeros_like(colsum_acc)
        counts_acc[...] = jnp.zeros_like(counts_acc)

    # First layer once per batch tile; reused across all label tiles.
    @pl.when(jj == 0)
    def _first_layer():
        h = jnp.dot(x_ref[...], w1_ref[...], preferred_element_type=jnp.float32)
        h = jnp.maximum(h + b1_ref[...], 0.0)
        h_scratch[...] = h.astype(h_scratch.dtype)

    logits = jnp.dot(h_scratch[...], w2_ref[...],
                     preferred_element_type=jnp.float32)
    logits = logits + b2_ref[...]                            # [tb, tile_l] f32

    # Label match from a (1, tile_l) lane iota vs the (tb, 1) label column
    # (no full [tb, tile_l] int32 iotas materialized).
    class_ids = jj * tile_l + lax.broadcasted_iota(jnp.int32, (1, tile_l), 1)
    lbl = labels_ref[...]                                    # [tb, 1] int32

    def _fold(a):  # [tb, tile_l] -> [8, tile_l]; sublane-group adds (pure VPU)
        return a.reshape(tb // 8, 8, tile_l).sum(axis=0)

    def _accumulate(row_valid):
        match = class_ids == lbl                             # [tb, tile_l] bool
        if row_valid is not None:
            match = jnp.logical_and(match, row_valid)
            col_src = jnp.where(row_valid, logits, 0.0)
        else:
            col_src = logits
        # counts in f32: exact while any per-class count stays below 2**24.
        diag_acc[jj] = diag_acc[jj] + _fold(jnp.where(match, logits, 0.0))
        colsum_acc[jj] = colsum_acc[jj] + _fold(col_src)
        counts_acc[jj] = counts_acc[jj] + _fold(jnp.where(match, 1.0, 0.0))

    if has_pad:
        rows_before = (c * n_i + i) * tb
        remaining = batch - rows_before                      # valid rows in tile
        needs_mask = remaining < tb

        @pl.when(needs_mask)
        def _masked_tile():
            row_valid = lax.broadcasted_iota(jnp.int32, (tb, 1), 0) < remaining
            _accumulate(row_valid)

        @pl.when(jnp.logical_not(needs_mask))
        def _full_tile():
            _accumulate(None)
    else:
        _accumulate(None)

    # Write current partials; the final visit (last batch tile) carries the
    # full per-chunk sums, which is what ends up in HBM.
    diag_out[...] = diag_acc[jj]
    colsum_out[...] = colsum_acc[jj]
    counts_out[...] = counts_acc[jj]


def club_for_categorical(x, labels, w1, b1, w2, b2, *,
                         block_b=None, tile_l=None, num_chunks=None,
                         compute_dtype=jnp.bfloat16):
    """positive - negative of CLUBForCategorical.forward (scalar f32)."""
    B, D = x.shape
    _, H = w1.shape
    _, L = w2.shape
    cd = jnp.dtype(compute_dtype)
    itemsize = cd.itemsize

    # Lane-dense padding of feature dims (exact: zero padding contributes 0).
    D_pad = _round_up(D, 128)
    H_pad = _round_up(H, 128)
    L_pad = _round_up(L, 128)

    if tile_l is None:
        tile_l = min(L_pad, 512)
    tile_l = min(max(128, _round_up(tile_l, 128)), L_pad)
    L_pad = _round_up(L_pad, tile_l)
    num_l_tiles = L_pad // tile_l

    if block_b is None:
        rows_budget = max(8, (1 << 21) // max(D_pad * itemsize, 1))  # ~2 MiB x tile
        block_b = min(512, rows_budget, _round_up(B, 8))
    block_b = max(8, (block_b // 8) * 8)

    tiles_total = _cdiv(B, block_b)
    if num_chunks is None:
        num_chunks = 2 if tiles_total >= 2 else 1   # both TCs on v7x
    num_chunks = max(1, min(num_chunks, tiles_total))
    tiles_per_chunk = _cdiv(tiles_total, num_chunks)
    B_pad = num_chunks * tiles_per_chunk * block_b
    has_pad = (B_pad != B)

    # Pad + cast inputs/weights (biases stay f32; added post-matmul).
    x_p = jnp.zeros((B_pad, D_pad), cd).at[:B, :D].set(x.astype(cd))
    labels_p = jnp.zeros((B_pad, 1), jnp.int32).at[:B, 0].set(labels.astype(jnp.int32))
    w1_p = jnp.zeros((D_pad, H_pad), cd).at[:D, :H].set(w1.astype(cd))
    b1_p = jnp.zeros((1, H_pad), jnp.float32).at[0, :H].set(b1.astype(jnp.float32))
    w2_p = jnp.zeros((H_pad, L_pad), cd).at[:H, :L].set(w2.astype(cd))
    b2_p = jnp.zeros((1, L_pad), jnp.float32).at[0, :L].set(b2.astype(jnp.float32))

    T = tiles_per_chunk
    x_spec = pl.BlockSpec((block_b, D_pad), lambda c, i, j: (c * T + i, 0))
    lbl_spec = pl.BlockSpec((block_b, 1), lambda c, i, j: (c * T + i, 0))
    w1_spec = pl.BlockSpec((D_pad, H_pad), lambda c, i, j: (0, 0))
    b1_spec = pl.BlockSpec((1, H_pad), lambda c, i, j: (0, 0))
    w2_spec = pl.BlockSpec((H_pad, tile_l), lambda c, i, j: (0, j))
    b2_spec = pl.BlockSpec((1, tile_l), lambda c, i, j: (0, j))
    out_spec = pl.BlockSpec((8, tile_l), lambda c, i, j: (c, j))

    scratch_shapes = [
        pltpu.VMEM((block_b, H_pad), cd),                     # h (reused across L tiles)
        pltpu.VMEM((num_l_tiles, 8, tile_l), jnp.float32),    # diag accumulator
        pltpu.VMEM((num_l_tiles, 8, tile_l), jnp.float32),    # column-sum accumulator
        pltpu.VMEM((num_l_tiles, 8, tile_l), jnp.float32),    # label-count accumulator
    ]

    flops = 2 * B_pad * (D_pad * H_pad + H_pad * L_pad)
    bytes_accessed = (B_pad * D_pad * itemsize + B_pad * 4
                      + D_pad * H_pad * itemsize
                      + tiles_per_chunk * H_pad * L_pad * itemsize
                      + 3 * num_chunks * 8 * L_pad * 4)
    cost = pl.CostEstimate(flops=int(flops), transcendentals=0,
                           bytes_accessed=int(bytes_accessed))

    vmem_est = (2 * block_b * D_pad * itemsize          # x (double buffered)
                + 2 * block_b * 128 * 4                 # labels (lane padded)
                + 2 * D_pad * H_pad * itemsize          # w1
                + 2 * 8 * H_pad * 4                     # b1
                + 2 * H_pad * tile_l * itemsize         # w2
                + 2 * 8 * tile_l * 4                    # b2
                + 3 * 2 * 8 * tile_l * 4                # outputs
                + block_b * H_pad * itemsize            # h scratch
                + 3 * num_l_tiles * 8 * tile_l * 4)     # accumulators
    vmem_limit = int(min(max(2 * vmem_est, 32 * 2**20), 56 * 2**20))

    kernel = functools.partial(_club_kernel, batch=B, has_pad=has_pad)

    diag_out, colsum_out, counts_out = pl.pallas_call(
        kernel,
        out_shape=(
            jax.ShapeDtypeStruct((num_chunks * 8, L_pad), jnp.float32),
            jax.ShapeDtypeStruct((num_chunks * 8, L_pad), jnp.float32),
            jax.ShapeDtypeStruct((num_chunks * 8, L_pad), jnp.float32),
        ),
        grid_spec=pltpu.PrefetchScalarGridSpec(
            num_scalar_prefetch=0,
            grid=(num_chunks, tiles_per_chunk, num_l_tiles),
            in_specs=[x_spec, lbl_spec, w1_spec, b1_spec, w2_spec, b2_spec],
            out_specs=[out_spec, out_spec, out_spec],
            scratch_shapes=scratch_shapes,
        ),
        compiler_params=pltpu.CompilerParams(
            dimension_semantics=("parallel", "arbitrary", "arbitrary"),
            vmem_limit_bytes=vmem_limit,
        ),
        cost_estimate=cost,
    )(x_p, labels_p, w1_p, b1_p, w2_p, b2_p)

    inv_b = 1.0 / float(B)
    positive = jnp.sum(diag_out) * inv_b
    col = jnp.sum(colsum_out, axis=0)                        # [L_pad]
    cnt = jnp.sum(counts_out, axis=0)                        # [L_pad]
    negative = jnp.sum(col * cnt) * (inv_b * inv_b)
    return (positive - negative).astype(jnp.float32)


if __name__ == "__main__":
    key = jax.random.PRNGKey(0)
    ks = jax.random.split(key, 12)

    def make_params(k1, k2, k3, k4, D, H, L):
        bd, bh = 1.0 / D ** 0.5, 1.0 / H ** 0.5
        return (jax.random.uniform(k1, (D, H), jnp.float32, -bd, bd),
                jax.random.uniform(k2, (H,), jnp.float32, -bd, bd),
                jax.random.uniform(k3, (H, L), jnp.float32, -bh, bh),
                jax.random.uniform(k4, (L,), jnp.float32, -bh, bh))

    def reference(x, labels, w1, b1, w2, b2, cd):
        # Matches the PyTorch module; matmuls use the same compute dtype path
        # as the kernel (bf16-in / f32-accumulate when cd == bfloat16).
        h = jnp.dot(x.astype(cd), w1.astype(cd),
                    preferred_element_type=jnp.float32) + b1
        h = jnp.maximum(h, 0.0)
        logits = jnp.dot(h.astype(cd), w2.astype(cd),
                         preferred_element_type=jnp.float32) + b2
        logp = jax.nn.log_softmax(logits, axis=-1)
        log_mat = logp[:, labels]
        return jnp.mean(jnp.diag(log_mat)) - jnp.mean(log_mat)

    # Case 1: single tile, bf16 compute (default).
    B, D, H, L = 8, 32, 32, 16
    w1, b1, w2, b2 = make_params(ks[0], ks[1], ks[2], ks[3], D, H, L)
    x = jax.random.normal(ks[4], (B, D), jnp.float32)
    labels = jax.random.randint(ks[5], (B,), 0, L, jnp.int32)
    got = club_for_categorical(x, labels, w1, b1, w2, b2)
    jax.block_until_ready(got)
    want = reference(x, labels, w1, b1, w2, b2, jnp.bfloat16)
    assert jnp.allclose(got, want, atol=3e-3, rtol=1e-2), (got, want)

    # Case 2: ragged batch, two chunks (parallel axis), padded tiles, f32 compute.
    B2 = 20
    x2 = jax.random.normal(ks[6], (B2, D), jnp.float32)
    labels2 = jax.random.randint(ks[7], (B2,), 0, L, jnp.int32)
    got2 = club_for_categorical(x2, labels2, w1, b1, w2, b2,
                                block_b=8, num_chunks=2,
                                compute_dtype=jnp.float32)
    jax.block_until_ready(got2)
    want2 = reference(x2, labels2, w1, b1, w2, b2, jnp.float32)
    assert jnp.allclose(got2, want2, atol=2e-4, rtol=2e-4), (got2, want2)

    # Case 3: label dim spanning multiple lane tiles (num_l_tiles > 1), bf16.
    B3, D3, H3, L3 = 24, 48, 64, 200
    w1c, b1c, w2c, b2c = make_params(ks[8], ks[9], ks[10], ks[11], D3, H3, L3)
    x3 = jax.random.normal(ks[4], (B3, D3), jnp.float32)
    labels3 = jax.random.randint(ks[5], (B3,), 0, L3, jnp.int32)
    got3 = club_for_categorical(x3, labels3, w1c, b1c, w2c, b2c,
                                block_b=8, tile_l=128)
    jax.block_until_ready(got3)
    want3 = reference(x3, labels3, w1c, b1c, w2c, b2c, jnp.bfloat16)
    assert jnp.allclose(got3, want3, atol=3e-3, rtol=1e-2), (got3, want3)

    print("KERNEL_OK")
</pallas_src>

<mosaic_0001>
module attributes {stable_mosaic.version = 11 : i64} {
  func.func @_club_kernel(%arg0: i32, %arg1: i32, %arg2: i32, %arg3: memref<8x128xbf16, #tpu.memory_space<vmem>>, %arg4: memref<8x1xi32, #tpu.memory_space<vmem>>, %arg5: memref<128x128xbf16, #tpu.memory_space<vmem>>, %arg6: memref<1x128xf32, #tpu.memory_space<vmem>>, %arg7: memref<128x128xbf16, #tpu.memory_space<vmem>>, %arg8: memref<1x128xf32, #tpu.memory_space<vmem>>, %arg9: memref<8x128xf32, #tpu.memory_space<vmem>>, %arg10: memref<8x128xf32, #tpu.memory_space<vmem>>, %arg11: memref<8x128xf32, #tpu.memory_space<vmem>>, %arg12: memref<8x128xbf16, #tpu.memory_space<vmem>>, %arg13: memref<1x8x128xf32, #tpu.memory_space<vmem>>, %arg14: memref<1x8x128xf32, #tpu.memory_space<vmem>>, %arg15: memref<1x8x128xf32, #tpu.memory_space<vmem>>) attributes {dimension_semantics = [#tpu.dimension_semantics<parallel>, #tpu.dimension_semantics<arbitrary>, #tpu.dimension_semantics<arbitrary>], iteration_bounds = array<i64: 1, 1, 1>, scalar_prefetch = 0 : i64, scratch_operands = 4 : i64, tpu.core_type = #tpu.core_type<tc>, window_params = [{transform_indices = @transform_0, window_bounds = array<i64: 8, 128>}, {transform_indices = @transform_1, window_bounds = array<i64: 8, 1>}, {pipeline_mode = #tpu.pipeline_mode<synchronous>, transform_indices = @transform_2, window_bounds = array<i64: 128, 128>}, {pipeline_mode = #tpu.pipeline_mode<synchronous>, transform_indices = @transform_3, window_bounds = array<i64: 1, 128>}, {transform_indices = @transform_4, window_bounds = array<i64: 128, 128>}, {transform_indices = @transform_5, window_bounds = array<i64: 1, 128>}, {transform_indices = @transform_6, window_bounds = array<i64: 8, 128>}, {transform_indices = @transform_7, window_bounds = array<i64: 8, 128>}, {transform_indices = @transform_8, window_bounds = array<i64: 8, 128>}]} {
    %c0_i32 = arith.constant 0 : i32
    %0 = arith.cmpi eq, %arg1, %c0_i32 : i32
    %c0_i32_0 = arith.constant 0 : i32
    %1 = arith.cmpi eq, %arg2, %c0_i32_0 : i32
    %2 = arith.andi %0, %1 : i1
    %3 = arith.extui %2 : i1 to i32
    %c0_i32_1 = arith.constant 0 : i32
    %4 = arith.cmpi ne, %3, %c0_i32_1 : i32
    scf.if %4 {
      %cst_41 = arith.constant 0.000000e+00 : f32
      %69 = vector.broadcast %cst_41 : f32 to vector<1x8x128xf32>
      %c0_42 = arith.constant 0 : index
      %c0_43 = arith.constant 0 : index
      %c0_44 = arith.constant 0 : index
      %70 = vector.load %arg13[%c0_42, %c0_43, %c0_44] : memref<1x8x128xf32, #tpu.memory_space<vmem>>, vector<1x8x128xf32>
      tpu.vector_store %arg13[%c0_42, %c0_43, %c0_44], %69 {strides = array<i32>} : memref<1x8x128xf32, #tpu.memory_space<vmem>>, vector<1x8x128xf32>,
      %cst_45 = arith.constant 0.000000e+00 : f32
      %71 = vector.broadcast %cst_45 : f32 to vector<1x8x128xf32>
      %c0_46 = arith.constant 0 : index
      %c0_47 = arith.constant 0 : index
      %c0_48 = arith.constant 0 : index
      %72 = vector.load %arg14[%c0_46, %c0_47, %c0_48] : memref<1x8x128xf32, #tpu.memory_space<vmem>>, vector<1x8x128xf32>
      tpu.vector_store %arg14[%c0_46, %c0_47, %c0_48], %71 {strides = array<i32>} : memref<1x8x128xf32, #tpu.memory_space<vmem>>, vector<1x8x128xf32>,
      %cst_49 = arith.constant 0.000000e+00 : f32
      %73 = vector.broadcast %cst_49 : f32 to vector<1x8x128xf32>
      %c0_50 = arith.constant 0 : index
      %c0_51 = arith.constant 0 : index
      %c0_52 = arith.constant 0 : index
      %74 = vector.load %arg15[%c0_50, %c0_51, %c0_52] : memref<1x8x128xf32, #tpu.memory_space<vmem>>, vector<1x8x128xf32>
      tpu.vector_store %arg15[%c0_50, %c0_51, %c0_52], %73 {strides = array<i32>} : memref<1x8x128xf32, #tpu.memory_space<vmem>>, vector<1x8x128xf32>,
    } else {
    }
    %c0_i32_2 = arith.constant 0 : i32
    %5 = arith.cmpi eq, %arg2, %c0_i32_2 : i32
    %6 = arith.extui %5 : i1 to i32
    %c0_i32_3 = arith.constant 0 : i32
    %7 = arith.cmpi ne, %6, %c0_i32_3 : i32
    scf.if %7 {
      %c0_41 = arith.constant 0 : index
      %c0_42 = arith.constant 0 : index
      %69 = vector.load %arg3[%c0_41, %c0_42] : memref<8x128xbf16, #tpu.memory_space<vmem>>, vector<8x128xbf16>
      %c0_43 = arith.constant 0 : index
      %c0_44 = arith.constant 0 : index
      %70 = vector.load %arg5[%c0_43, %c0_44] : memref<128x128xbf16, #tpu.memory_space<vmem>>, vector<128x128xbf16>
      %cst_45 = arith.constant dense<0.000000e+00> : vector<8x128xf32>
      %71 = tpu.matmul %69, %70, %cst_45 {dimension_numbers = #tpu.dot_dimension_numbers<[1], [0], [0], [1], [0, 0, 1, 1], [], []>} : vector<8x128xbf16>, vector<128x128xbf16>, vector<8x128xf32> -> vector<8x128xf32>
      %c0_46 = arith.constant 0 : index
      %c0_47 = arith.constant 0 : index
      %72 = vector.load %arg6[%c0_46, %c0_47] : memref<1x128xf32, #tpu.memory_space<vmem>>, vector<1x128xf32>
      %73 = vector.broadcast %72 : vector<1x128xf32> to vector<8x128xf32>
      %74 = arith.addf %71, %73 : vector<8x128xf32>
      %cst_48 = arith.constant 0.000000e+00 : f32
      %75 = vector.broadcast %cst_48 : f32 to vector<8x128xf32>
      %76 = arith.maximumf %74, %75 : vector<8x128xf32>
      %77 = arith.truncf %76 : vector<8x128xf32> to vector<8x128xbf16>
      %c0_49 = arith.constant 0 : index
      %c0_50 = arith.constant 0 : index
      %78 = vector.load %arg12[%c0_49, %c0_50] : memref<8x128xbf16, #tpu.memory_space<vmem>>, vector<8x128xbf16>
      tpu.vector_store %arg12[%c0_49, %c0_50], %77 {strides = array<i32>} : memref<8x128xbf16, #tpu.memory_space<vmem>>, vector<8x128xbf16>,
    } else {
    }
    %c0 = arith.constant 0 : index
    %c0_4 = arith.constant 0 : index
    %8 = vector.load %arg12[%c0, %c0_4] : memref<8x128xbf16, #tpu.memory_space<vmem>>, vector<8x128xbf16>
    %c0_5 = arith.constant 0 : index
    %c0_6 = arith.constant 0 : index
    %9 = vector.load %arg7[%c0_5, %c0_6] : memref<128x128xbf16, #tpu.memory_space<vmem>>, vector<128x128xbf16>
    %cst = arith.constant dense<0.000000e+00> : vector<8x128xf32>
    %10 = tpu.matmul %8, %9, %cst {dimension_numbers = #tpu.dot_dimension_numbers<[1], [0], [0], [1], [0, 0, 1, 1], [], []>} : vector<8x128xbf16>, vector<128x128xbf16>, vector<8x128xf32> -> vector<8x128xf32>
    %c0_7 = arith.constant 0 : index
    %c0_8 = arith.constant 0 : index
    %11 = vector.load %arg8[%c0_7, %c0_8] : memref<1x128xf32, #tpu.memory_space<vmem>>, vector<1x128xf32>
    %12 = vector.broadcast %11 : vector<1x128xf32> to vector<8x128xf32>
    %13 = arith.addf %10, %12 : vector<8x128xf32>
    %c128_i32 = arith.constant 128 : i32
    %14 = arith.muli %arg2, %c128_i32 : i32
    %15 = tpu.iota {dimensions = array<i32: 1>} : vector<1x128xi32>
    %16 = vector.broadcast %14 : i32 to vector<1x128xi32>
    %17 = arith.addi %16, %15 : vector<1x128xi32>
    %c0_9 = arith.constant 0 : index
    %c0_10 = arith.constant 0 : index
    %18 = vector.load %arg4[%c0_9, %c0_10] : memref<8x1xi32, #tpu.memory_space<vmem>>, vector<8x1xi32>
    %19 = vector.broadcast %17 : vector<1x128xi32> to vector<8x128xi32>
    %20 = vector.broadcast %18 : vector<8x1xi32> to vector<8x128xi32>
    %21 = arith.cmpi eq, %19, %20 : vector<8x128xi32>
    %22 = arith.index_cast %arg2 : i32 to index
    %c0_11 = arith.constant 0 : index
    %c0_12 = arith.constant 0 : index
    %23 = vector.load %arg13[%22, %c0_11, %c0_12] : memref<1x8x128xf32, #tpu.memory_space<vmem>>, vector<1x8x128xf32>
    %24 = vector.shape_cast %23 : vector<1x8x128xf32> to vector<8x128xf32>
    %cst_13 = arith.constant 0.000000e+00 : f32
    %25 = vector.broadcast %cst_13 : f32 to vector<8x128xf32>
    %26 = arith.select %21, %13, %25 : vector<8x128xi1>, vector<8x128xf32>
    %27 = vector.shape_cast %26 : vector<8x128xf32> to vector<1x8x128xf32>
    %cst_14 = arith.constant dense<0.000000e+00> : vector<8x128xf32>
    %28 = vector.multi_reduction <add>, %27, %cst_14 [0] : vector<1x8x128xf32> to vector<8x128xf32>
    %29 = arith.addf %24, %28 : vector<8x128xf32>
    %30 = arith.index_cast %arg2 : i32 to index
    %c0_15 = arith.constant 0 : index
    %c0_16 = arith.constant 0 : index
    %31 = vector.load %arg13[%30, %c0_15, %c0_16] : memref<1x8x128xf32, #tpu.memory_space<vmem>>, vector<1x8x128xf32>
    %32 = vector.shape_cast %31 : vector<1x8x128xf32> to vector<8x128xf32>
    %33 = vector.shape_cast %29 : vector<8x128xf32> to vector<1x8x128xf32>
    tpu.vector_store %arg13[%30, %c0_15, %c0_16], %33 {strides = array<i32>} : memref<1x8x128xf32, #tpu.memory_space<vmem>>, vector<1x8x128xf32>,
    %34 = arith.index_cast %arg2 : i32 to index
    %c0_17 = arith.constant 0 : index
    %c0_18 = arith.constant 0 : index
    %35 = vector.load %arg14[%34, %c0_17, %c0_18] : memref<1x8x128xf32, #tpu.memory_space<vmem>>, vector<1x8x128xf32>
    %36 = vector.shape_cast %35 : vector<1x8x128xf32> to vector<8x128xf32>
    %37 = vector.shape_cast %13 : vector<8x128xf32> to vector<1x8x128xf32>
    %cst_19 = arith.constant dense<0.000000e+00> : vector<8x128xf32>
    %38 = vector.multi_reduction <add>, %37, %cst_19 [0] : vector<1x8x128xf32> to vector<8x128xf32>
    %39 = arith.addf %36, %38 : vector<8x128xf32>
    %40 = arith.index_cast %arg2 : i32 to index
    %c0_20 = arith.constant 0 : index
    %c0_21 = arith.constant 0 : index
    %41 = vector.load %arg14[%40, %c0_20, %c0_21] : memref<1x8x128xf32, #tpu.memory_space<vmem>>, vector<1x8x128xf32>
    %42 = vector.shape_cast %41 : vector<1x8x128xf32> to vector<8x128xf32>
    %43 = vector.shape_cast %39 : vector<8x128xf32> to vector<1x8x128xf32>
    tpu.vector_store %arg14[%40, %c0_20, %c0_21], %43 {strides = array<i32>} : memref<1x8x128xf32, #tpu.memory_space<vmem>>, vector<1x8x128xf32>,
    %44 = arith.index_cast %arg2 : i32 to index
    %c0_22 = arith.constant 0 : index
    %c0_23 = arith.constant 0 : index
    %45 = vector.load %arg15[%44, %c0_22, %c0_23] : memref<1x8x128xf32, #tpu.memory_space<vmem>>, vector<1x8x128xf32>
    %46 = vector.shape_cast %45 : vector<1x8x128xf32> to vector<8x128xf32>
    %cst_24 = arith.constant 1.000000e+00 : f32
    %cst_25 = arith.constant 0.000000e+00 : f32
    %47 = vector.broadcast %cst_24 : f32 to vector<8x128xf32>
    %48 = vector.broadcast %cst_25 : f32 to vector<8x128xf32>
    %49 = arith.select %21, %47, %48 : vector<8x128xi1>, vector<8x128xf32>
    %50 = vector.shape_cast %49 : vector<8x128xf32> to vector<1x8x128xf32>
    %cst_26 = arith.constant dense<0.000000e+00> : vector<8x128xf32>
    %51 = vector.multi_reduction <add>, %50, %cst_26 [0] : vector<1x8x128xf32> to vector<8x128xf32>
    %52 = arith.addf %46, %51 : vector<8x128xf32>
    %53 = arith.index_cast %arg2 : i32 to index
    %c0_27 = arith.constant 0 : index
    %c0_28 = arith.constant 0 : index
    %54 = vector.load %arg15[%53, %c0_27, %c0_28] : memref<1x8x128xf32, #tpu.memory_space<vmem>>, vector<1x8x128xf32>
    %55 = vector.shape_cast %54 : vector<1x8x128xf32> to vector<8x128xf32>
    %56 = vector.shape_cast %52 : vector<8x128xf32> to vector<1x8x128xf32>
    tpu.vector_store %arg15[%53, %c0_27, %c0_28], %56 {strides = array<i32>} : memref<1x8x128xf32, #tpu.memory_space<vmem>>, vector<1x8x128xf32>,
    %57 = arith.index_cast %arg2 : i32 to index
    %c0_29 = arith.constant 0 : index
    %c0_30 = arith.constant 0 : index
    %58 = vector.load %arg13[%57, %c0_29, %c0_30] : memref<1x8x128xf32, #tpu.memory_space<vmem>>, vector<1x8x128xf32>
    %59 = vector.shape_cast %58 : vector<1x8x128xf32> to vector<8x128xf32>
    %c0_31 = arith.constant 0 : index
    %c0_32 = arith.constant 0 : index
    %60 = vector.load %arg9[%c0_31, %c0_32] : memref<8x128xf32, #tpu.memory_space<vmem>>, vector<8x128xf32>
    tpu.vector_store %arg9[%c0_31, %c0_32], %59 {strides = array<i32>} : memref<8x128xf32, #tpu.memory_space<vmem>>, vector<8x128xf32>,
    %61 = arith.index_cast %arg2 : i32 to index
    %c0_33 = arith.constant 0 : index
    %c0_34 = arith.constant 0 : index
    %62 = vector.load %arg14[%61, %c0_33, %c0_34] : memref<1x8x128xf32, #tpu.memory_space<vmem>>, vector<1x8x128xf32>
    %63 = vector.shape_cast %62 : vector<1x8x128xf32> to vector<8x128xf32>
    %c0_35 = arith.constant 0 : index
    %c0_36 = arith.constant 0 : index
    %64 = vector.load %arg10[%c0_35, %c0_36] : memref<8x128xf32, #tpu.memory_space<vmem>>, vector<8x128xf32>
    tpu.vector_store %arg10[%c0_35, %c0_36], %63 {strides = array<i32>} : memref<8x128xf32, #tpu.memory_space<vmem>>, vector<8x128xf32>,
    %65 = arith.index_cast %arg2 : i32 to index
    %c0_37 = arith.constant 0 : index
    %c0_38 = arith.constant 0 : index
    %66 = vector.load %arg15[%65, %c0_37, %c0_38] : memref<1x8x128xf32, #tpu.memory_space<vmem>>, vector<1x8x128xf32>
    %67 = vector.shape_cast %66 : vector<1x8x128xf32> to vector<8x128xf32>
    %c0_39 = arith.constant 0 : index
    %c0_40 = arith.constant 0 : index
    %68 = vector.load %arg11[%c0_39, %c0_40] : memref<8x128xf32, #tpu.memory_space<vmem>>, vector<8x128xf32>
    tpu.vector_store %arg11[%c0_39, %c0_40], %67 {strides = array<i32>} : memref<8x128xf32, #tpu.memory_space<vmem>>, vector<8x128xf32>,
    return
  }
  func.func @transform_0(%arg0: i32, %arg1: i32, %arg2: i32) -> (i32, i32) {
    %c1_i32 = arith.constant 1 : i32
    %0 = arith.muli %arg0, %c1_i32 : i32
    %1 = arith.addi %0, %arg1 : i32
    %c0_i32 = arith.constant 0 : i32
    %c0_i32_0 = arith.constant 0 : i32
    return %1, %c0_i32 : i32, i32
  }
  func.func @transform_1(%arg0: i32, %arg1: i32, %arg2: i32) -> (i32, i32) {
    %c1_i32 = arith.constant 1 : i32
    %0 = arith.muli %arg0, %c1_i32 : i32
    %1 = arith.addi %0, %arg1 : i32
    %c0_i32 = arith.constant 0 : i32
    %c0_i32_0 = arith.constant 0 : i32
    return %1, %c0_i32 : i32, i32
  }
  func.func @transform_2(%arg0: i32, %arg1: i32, %arg2: i32) -> (i32, i32) {
    %c0_i32 = arith.constant 0 : i32
    %c0_i32_0 = arith.constant 0 : i32
    %c0_i32_1 = arith.constant 0 : i32
    return %c0_i32, %c0_i32_0 : i32, i32
  }
  func.func @transform_3(%arg0: i32, %arg1: i32, %arg2: i32) -> (i32, i32) {
    %c0_i32 = arith.constant 0 : i32
    %c0_i32_0 = arith.constant 0 : i32
    %c0_i32_1 = arith.constant 0 : i32
    return %c0_i32, %c0_i32_0 : i32, i32
  }
  func.func @transform_4(%arg0: i32, %arg1: i32, %arg2: i32) -> (i32, i32) {
    %c0_i32 = arith.constant 0 : i32
    %c0_i32_0 = arith.constant 0 : i32
    return %c0_i32, %arg2 : i32, i32
  }
  func.func @transform_5(%arg0: i32, %arg1: i32, %arg2: i32) -> (i32, i32) {
    %c0_i32 = arith.constant 0 : i32
    %c0_i32_0 = arith.constant 0 : i32
    return %c0_i32, %arg2 : i32, i32
  }
  func.func @transform_6(%arg0: i32, %arg1: i32, %arg2: i32) -> (i32, i32) {
    %c0_i32 = arith.constant 0 : i32
    return %arg0, %arg2 : i32, i32
  }
  func.func @transform_7(%arg0: i32, %arg1: i32, %arg2: i32) -> (i32, i32) {
    %c0_i32 = arith.constant 0 : i32
    return %arg0, %arg2 : i32, i32
  }
  func.func @transform_8(%arg0: i32, %arg1: i32, %arg2: i32) -> (i32, i32) {
    %c0_i32 = arith.constant 0 : i32
    return %arg0, %arg2 : i32, i32
  }
}

</mosaic_0001>

<llo_original>
// kernel: tpu_custom_call.1
$region0: #{tpu_custom_call.1}
  #allocation0 [shape = 'u32[]', space=smem, size = 0x4, offset = 0x4, fixed_abs, tag = 'smem constant byte address 0x4 - core index']
  #allocation1 [shape = 'u32[72,128]{1,0:T(1,128)}', space=vmem, size = 0x9000, scoped, tag = 'internal scratch']
  #allocation2 [shape = 'bf16[8,128]{1,0:T(8,128)(2,1)}', space=vmem, size = 0x800, scoped, tag = 'scratch operand']
  #allocation3 [shape = 'f32[1,8,128]{2,1,0:T(8,128)}', space=vmem, size = 0x1000, scoped, tag = 'scratch operand']
  #allocation4 [shape = 'f32[1,8,128]{2,1,0:T(8,128)}', space=vmem, size = 0x1000, scoped, tag = 'scratch operand']
  #allocation5 [shape = 'f32[1,8,128]{2,1,0:T(8,128)}', space=vmem, size = 0x1000, scoped, tag = 'scratch operand']
  %s0 = inlined_call_operand.vmem [shape: bf16[8,128], index: 0, kind: input, shape index: {}]
  %s1 = inlined_call_operand.vmem [shape: s32[8,1], index: 1, kind: input, shape index: {}]
  %s2 = inlined_call_operand.hbm [shape: bf16[128,128], index: 2, kind: input, shape index: {}]
  %s3 = inlined_call_operand.vmem [shape: f32[1,128], index: 3, kind: input, shape index: {}]
  %s4 = inlined_call_operand.hbm [shape: bf16[128,128], index: 4, kind: input, shape index: {}]
  %s5 = inlined_call_operand.vmem [shape: f32[1,128], index: 5, kind: input, shape index: {}]
  %s6 = inlined_call_operand.hbm [shape: f32[8,128], index: 6, kind: output, shape index: {0}]
  %s7 = inlined_call_operand.hbm [shape: f32[8,128], index: 7, kind: output, shape index: {1}]
  %s8 = inlined_call_operand.hbm [shape: f32[8,128], index: 8, kind: output, shape index: {2}]
  %9 = xla_tuple %s6, %s7, %s8
  %s10 = sld [smem:[#allocation0]]
  $region66: #{tpu_custom_call.1} parent=0
    _
  %s12 = ssub.s32 1, %s10
  %s13 = scalar_select 0, %s12, %s10
  $region1: #{tpu_custom_call.1} parent=0
    #allocation6 [shape = 'u8[32768]{0}', space=vmem, size = 0x8000, scoped, tag = 'input window, operand 2, single buffered']
    #allocation7 [shape = 's32[1]{0}', space=sflag, size = 0x4, scoped, tag = 'scoped memory for tpu_custom_call.1']
    #allocation8 [shape = 's32[1]{0}', space=sflag, size = 0x4, scoped, tag = 'scoped memory for tpu_custom_call.1']
    #allocation9 [shape = 'u8[32768]{0}', space=vmem, size = 0x8000, scoped, tag = 'input window, operand 4, single buffered']
    #allocation10 [shape = 's32[1]{0}', space=sflag, size = 0x4, scoped, tag = 'scoped memory for tpu_custom_call.1']
    #allocation11 [shape = 'u8[4096]{0}', space=vmem, size = 0x1000, scoped, tag = 'output window, operand 0, single buffered']
    #allocation12 [shape = 'u8[4096]{0}', space=vmem, size = 0x1000, scoped, tag = 'output window, operand 1, single buffered']
    #allocation13 [shape = 's32[1]{0}', space=sflag, size = 0x4, scoped, tag = 'scoped memory for tpu_custom_call.1']
    #allocation14 [shape = 'u8[4096]{0}', space=vmem, size = 0x1000, scoped, tag = 'output window, operand 2, single buffered']
    %14 = vsyncpa [#allocation7], 0
    %15 = vsyncpa [#allocation10], 0
    %16 = vsyncpa [#allocation8], 0
    %17 = vsyncpa [#allocation13], 0
    // Predicated region
    $region2: #{tpu_custom_call.1} parent=1 // pred_check
      _
    $region3: #{tpu_custom_call.1} parent=1 // pred_check_branch
      %19 = sbr.rel (0) target = $region5
    $region4: #{tpu_custom_call.1} parent=1 // pred_region
      %s20 = sadd.s32 0, 0
      %p21 = scmp.lt.s32.totalorder %s20, 0
      %s22 = scalar_select %p21, %s20, 0
      %s23 = smul.addr %s22, 4
      %s24 = scalar_lea.vmem %s0, %s23
      %s25 = sadd.s32 0, 0
    $region5: #{tpu_custom_call.1} parent=1 // pred_fallthru
      _
    // Predicated region
    $region6: #{tpu_custom_call.1} parent=1 // pred_check
      _
    $region7: #{tpu_custom_call.1} parent=1 // pred_check_branch
      %27 = sbr.rel (0) target = $region9
    $region8: #{tpu_custom_call.1} parent=1 // pred_region
      %s28 = sadd.s32 0, 0
      %p29 = scmp.lt.s32.totalorder %s28, 0
      %s30 = scalar_select %p29, %s28, 0
      %s31 = smul.addr %s30, 8
      %s32 = scalar_lea.vmem %s1, %s31
      %s33 = sadd.s32 0, 0
    $region9: #{tpu_custom_call.1} parent=1 // pred_fallthru
      _
    // Predicated region
    $region10: #{tpu_custom_call.1} parent=1 // pred_check
      _
    $region11: #{tpu_custom_call.1} parent=1 // pred_check_branch
      %35 = sbr.rel (0) target = $region13
    $region12: #{tpu_custom_call.1} parent=1 // pred_region
      %37 = vsyncadd [#allocation7], 0
      %s38 = sshll.u32 %s2, 4
      %s39 = int_to_ptr.hbm [resolvable:$true] %s38
      %s40 = sshll.u32 [#allocation6], 4
      %s41 = int_to_ptr.vmem [resolvable:$true] %s40
      %46 = dma.hbm_to_vmem [thread:$0]  %s39, 1024, %s41, [#allocation7], 64, 64, 4
    $region13: #{tpu_custom_call.1} parent=1 // pred_fallthru
      _
    // Predicated region
    $region14: #{tpu_custom_call.1} parent=1 // pred_check
      _
    $region15: #{tpu_custom_call.1} parent=1 // pred_check_branch
      %48 = sbr.rel (0) target = $region17
    $region16: #{tpu_custom_call.1} parent=1 // pred_region
      _
    $region17: #{tpu_custom_call.1} parent=1 // pred_fallthru
      _
    // Predicated region
    $region18: #{tpu_custom_call.1} parent=1 // pred_check
      _
    $region19: #{tpu_custom_call.1} parent=1 // pred_check_branch
      %50 = sbr.rel (0) target = $region21
    $region20: #{tpu_custom_call.1} parent=1 // pred_region
      %52 = vsyncadd [#allocation10], 0
      %s53 = sshll.u32 %s4, 4
      %s54 = int_to_ptr.hbm [resolvable:$true] %s53
      %s55 = sshll.u32 [#allocation9], 4
      %s56 = int_to_ptr.vmem [resolvable:$true] %s55
      %61 = dma.hbm_to_vmem [thread:$0]  %s54, 1024, %s56, [#allocation10], 64, 64, 4
    $region21: #{tpu_custom_call.1} parent=1 // pred_fallthru
      _
    // Predicated region
    $region22: #{tpu_custom_call.1} parent=1 // pred_check
      _
    $region23: #{tpu_custom_call.1} parent=1 // pred_check_branch
      %63 = sbr.rel (0) target = $region25
    $region24: #{tpu_custom_call.1} parent=1 // pred_region
      _
    $region25: #{tpu_custom_call.1} parent=1 // pred_fallthru
      _
    // Predicated region
    $region26: #{tpu_custom_call.1} parent=1 // pred_check
      _
    $region27: #{tpu_custom_call.1} parent=1 // pred_check_branch
      %65 = sbr.rel (0) target = $region29
    $region28: #{tpu_custom_call.1} parent=1 // pred_region
      %67 = dma.done [#allocation7], 1024
    $region29: #{tpu_custom_call.1} parent=1 // pred_fallthru
      _
    // Predicated region
    $region30: #{tpu_custom_call.1} parent=1 // pred_check
      _
    $region31: #{tpu_custom_call.1} parent=1 // pred_check_branch
      %69 = sbr.rel (0) target = $region33
    $region32: #{tpu_custom_call.1} parent=1 // pred_region
      %71 = dma.done [#allocation10], 1024
    $region33: #{tpu_custom_call.1} parent=1 // pred_fallthru
      _
    %s72 = sadd.s32 0, 0
    %p73 = scmp.lt.s32.totalorder %s72, 0
    %s74 = scalar_select %p73, %s72, 0
    %s75 = smul.addr %s74, 4
    %s76 = scalar_lea.vmem %s0, %s75
    %s77 = sadd.s32 0, 0
    %p78 = scmp.lt.s32.totalorder %s77, 0
    %s79 = scalar_select %p78, %s77, 0
    %s80 = smul.addr %s79, 8
    %s81 = scalar_lea.vmem %s1, %s80
    %s82 = sadd.s32 0, 0
    %p83 = scmp.lt.s32.totalorder %s82, 0
    %s84 = scalar_select %p83, %s82, 0
    %s85 = smul.addr %s84, 4
    %s86 = scalar_lea.vmem %s0, %s85
    %s87 = sadd.s32 0, 0
    %s88 = sadd.s32 0, 0
    %p89 = scmp.lt.s32.totalorder %s88, 0
    %s90 = scalar_select %p89, %s88, 0
    %s91 = smul.addr %s90, 8
    %s92 = scalar_lea.vmem %s1, %s91
    %s93 = sadd.s32 0, 0
    %p94 = scmp.eq.s32.totalorder 0, 0
    %p95 = scmp.eq.s32.totalorder 0, 0
    %p96 = pnand %p94, %p95
    %p97 = pneg %p96
    // Predicated region
    $region34: #{tpu_custom_call.1} parent=1 // pred_check
      _
    $region35: #{tpu_custom_call.1} parent=1 // pred_check_branch
      %99 = sbr.rel (%p96) target = $region37
    $region36: #{tpu_custom_call.1} parent=1 // pred_region
      %100 = vst [vmem:[#allocation3] sm:$0xff] 0.0
      %101 = vst [vmem:[#allocation4] sm:$0xff] 0.0
      %102 = vst [vmem:[#allocation5] sm:$0xff] 0.0
    $region37: #{tpu_custom_call.1} parent=1 // pred_fallthru
      _
    // Predicated region
    $region38: #{tpu_custom_call.1} parent=1 // pred_check
      %p103 = pneg %p95
    $region39: #{tpu_custom_call.1} parent=1 // pred_check_branch
      %105 = sbr.rel (%p103) target = $region41
    $region40: #{tpu_custom_call.1} parent=1 // pred_region
      %v106 = vld [vmem:[%s86] sm:$0xf]
      %v107 = vld [vmem:[#allocation6] sm:$0xf]
      %v108 = vld [vmem:[#allocation6 + $0x4] sm:$0xf]
      %v109 = vld [vmem:[#allocation6 + $0x8] sm:$0xf]
      %v110 = vld [vmem:[#allocation6 + $0xc] sm:$0xf]
      %v111 = vld [vmem:[#allocation6 + $0x10] sm:$0xf]
      %v112 = vld [vmem:[#allocation6 + $0x14] sm:$0xf]
      %v113 = vld [vmem:[#allocation6 + $0x18] sm:$0xf]
      %v114 = vld [vmem:[#allocation6 + $0x1c] sm:$0xf]
      %v115 = vld [vmem:[#allocation6 + $0x20] sm:$0xf]
      %v116 = vld [vmem:[#allocation6 + $0x24] sm:$0xf]
      %v117 = vld [vmem:[#allocation6 + $0x28] sm:$0xf]
      %v118 = vld [vmem:[#allocation6 + $0x2c] sm:$0xf]
      %v119 = vld [vmem:[#allocation6 + $0x30] sm:$0xf]
      %v120 = vld [vmem:[#allocation6 + $0x34] sm:$0xf]
      %v121 = vld [vmem:[#allocation6 + $0x38] sm:$0xf]
      %v122 = vld [vmem:[#allocation6 + $0x3c] sm:$0xf]
      %v123 = vld [vmem:[%s3] sm:$0x1]
      %v125 = vperm.slane %v123, 0
      %v143 = vunpack.c.l.b16 %v107
      %v144 = vunpack.c.l.b16 %v108
      %v145 = vunpack.c.l.b16 %v109
      %v146 = vunpack.c.l.b16 %v110
      %v147 = vunpack.c.l.b16 %v111
      %v148 = vunpack.c.l.b16 %v112
      %v149 = vunpack.c.l.b16 %v113
      %v150 = vunpack.c.l.b16 %v114
      %v151 = vunpack.c.l.b16 %v115
      %v152 = vunpack.c.l.b16 %v116
      %v153 = vunpack.c.l.b16 %v117
      %v154 = vunpack.c.l.b16 %v118
      %v155 = vunpack.c.l.b16 %v119
      %v156 = vunpack.c.l.b16 %v120
      %v157 = vunpack.c.l.b16 %v121
      %v158 = vunpack.c.l.b16 %v122
      %v159 = vpack.c.b16 %v144, %v143
      %v160 = vpack.c.b16 %v146, %v145
      %v161 = vpack.c.b16 %v148, %v147
      %v162 = vpack.c.b16 %v150, %v149
      %v163 = vpack.c.b16 %v152, %v151
      %v164 = vpack.c.b16 %v154, %v153
      %v165 = vpack.c.b16 %v156, %v155
      %v166 = vpack.c.b16 %v158, %v157
      %175 = vmatpush.bf16.msra.mxu0 %v166
      %176 = vmatpush.bf16.msra.mxu0 %v165
      %177 = vmatpush.bf16.msra.mxu0 %v164
      %178 = vmatpush.bf16.msra.mxu0 %v163
      %179 = vmatpush.bf16.msra.mxu0 %v162
      %180 = vmatpush.bf16.msra.mxu0 %v161
      %181 = vmatpush.bf16.msra.mxu0 %v160
      %182 = vmatpush.bf16.msra.mxu0 %v159
      %183 = vmatmul.bf16.gmra.mxu0 %v106
      %v184 = vpop.f32.mrf.mxu0
      %v185 = vadd.f32 %v125, %v184
      %v186 = vpop.f32.mrf.mxu0
      %187 = vdwg.mxu0
      %v188 = vmax.f32 %v185, 0.0
      %v189 = vpack.c.bf16 %v188, %v188
      %190 = vst [vmem:[#allocation2] sm:$0xf] %v189
    $region41: #{tpu_custom_call.1} parent=1 // pred_fallthru
      _
    %v191 = vld [vmem:[#allocation2] sm:$0xf]
    %v192 = vld [vmem:[#allocation9] sm:$0xf]
    %v193 = vld [vmem:[#allocation9 + $0x4] sm:$0xf]
    %v194 = vld [vmem:[#allocation9 + $0x8] sm:$0xf]
    %v195 = vld [vmem:[#allocation9 + $0xc] sm:$0xf]
    %v196 = vld [vmem:[#allocation9 + $0x10] sm:$0xf]
    %v197 = vld [vmem:[#allocation9 + $0x14] sm:$0xf]
    %v198 = vld [vmem:[#allocation9 + $0x18] sm:$0xf]
    %v199 = vld [vmem:[#allocation9 + $0x1c] sm:$0xf]
    %v200 = vld [vmem:[#allocation9 + $0x20] sm:$0xf]
    %v201 = vld [vmem:[#allocation9 + $0x24] sm:$0xf]
    %v202 = vld [vmem:[#allocation9 + $0x28] sm:$0xf]
    %v203 = vld [vmem:[#allocation9 + $0x2c] sm:$0xf]
    %v204 = vld [vmem:[#allocation9 + $0x30] sm:$0xf]
    %v205 = vld [vmem:[#allocation9 + $0x34] sm:$0xf]
    %v206 = vld [vmem:[#allocation9 + $0x38] sm:$0xf]
    %v207 = vld [vmem:[#allocation9 + $0x3c] sm:$0xf]
    %v208 = vld [vmem:[%s5] sm:$0x1]
    %v210 = vperm.slane %v208, 0
    %v228 = vunpack.c.l.b16 %v192
    %v229 = vunpack.c.l.b16 %v193
    %v230 = vunpack.c.l.b16 %v194
    %v231 = vunpack.c.l.b16 %v195
    %v232 = vunpack.c.l.b16 %v196
    %v233 = vunpack.c.l.b16 %v197
    %v234 = vunpack.c.l.b16 %v198
    %v235 = vunpack.c.l.b16 %v199
    %v236 = vunpack.c.l.b16 %v200
    %v237 = vunpack.c.l.b16 %v201
    %v238 = vunpack.c.l.b16 %v202
    %v239 = vunpack.c.l.b16 %v203
    %v240 = vunpack.c.l.b16 %v204
    %v241 = vunpack.c.l.b16 %v205
    %v242 = vunpack.c.l.b16 %v206
    %v243 = vunpack.c.l.b16 %v207
    %v244 = vpack.c.b16 %v229, %v228
    %v245 = vpack.c.b16 %v231, %v230
    %v246 = vpack.c.b16 %v233, %v232
    %v247 = vpack.c.b16 %v235, %v234
    %v248 = vpack.c.b16 %v237, %v236
    %v249 = vpack.c.b16 %v239, %v238
    %v250 = vpack.c.b16 %v241, %v240
    %v251 = vpack.c.b16 %v243, %v242
    %260 = vmatpush.bf16.msra.mxu0 %v251
    %261 = vmatpush.bf16.msra.mxu0 %v250
    %262 = vmatpush.bf16.msra.mxu0 %v249
    %263 = vmatpush.bf16.msra.mxu0 %v248
    %264 = vmatpush.bf16.msra.mxu0 %v247
    %265 = vmatpush.bf16.msra.mxu0 %v246
    %266 = vmatpush.bf16.msra.mxu0 %v245
    %267 = vmatpush.bf16.msra.mxu0 %v244
    %268 = vmatmul.bf16.gmra.mxu0 %v191
    %v269 = vpop.f32.mrf.mxu0
    %v270 = vadd.f32 %v210, %v269
    %v271 = vpop.f32.mrf.mxu0
    %272 = vdwg.mxu0
    %s273 = smul.u32 0, 128
    %v274 = vlaneseq
    %v275 = vand.u32 %v274, 127
    %v276 = vstv %s273
    %v277 = vadd.s32 %v276, %v275
    %v278 = vld [vmem:[%s92] sm:$0xff]
    %279 = vset.pattern.permute.xlu0 0
    %280 = vperm.xlu0 %279, %v278
    %v281 = vpop.permute.xlu0 %280
    %vm282 = vcmp.eq.s32.totalorder %v277, %v281
    %s283 = smul.u32 0, 8
    %s284 = scalar_lea.vmem [#allocation3], %s283
    %v285 = vld [vmem:[%s284] sm:$0xff]
    %v286 = vsel %vm282, %v270, 0.0
    %v287 = vadd.f32 %v286, 0.0
    %v288 = vadd.f32 %v285, %v287
    %289 = vst [vmem:[%s284] sm:$0xff] %v288
    %s290 = scalar_lea.vmem [#allocation4], %s283
    %v291 = vld [vmem:[%s290] sm:$0xff]
    %v292 = vadd.f32 %v270, 0.0
    %v293 = vadd.f32 %v291, %v292
    %294 = vst [vmem:[%s290] sm:$0xff] %v293
    %s295 = scalar_lea.vmem [#allocation5], %s283
    %v296 = vld [vmem:[%s295] sm:$0xff]
    %v297 = vsel %vm282, 1.0, 0.0
    %v298 = vadd.f32 %v297, 0.0
    %v299 = vadd.f32 %v296, %v298
    %300 = vst [vmem:[%s295] sm:$0xff] %v299
    %v301 = vld [vmem:[%s284] sm:$0xff]
    %302 = vst [vmem:[#allocation11] sm:$0xff] %v301
    %v303 = vld [vmem:[%s290] sm:$0xff]
    %304 = vst [vmem:[#allocation12] sm:$0xff] %v303
    %v305 = vld [vmem:[%s295] sm:$0xff]
    %306 = vst [vmem:[#allocation14] sm:$0xff] %v305
    // Predicated region
    $region42: #{tpu_custom_call.1} parent=1 // pred_check
      _
    $region43: #{tpu_custom_call.1} parent=1 // pred_check_branch
      %308 = sbr.rel (0) target = $region45
    $region44: #{tpu_custom_call.1} parent=1 // pred_region
      %310 = vsyncadd [#allocation8], 0
      %s312 = sshll.u32 [#allocation11], 4
      %s313 = int_to_ptr.vmem [resolvable:$true] %s312
      %s314 = sshll.u32 %s6, 4
      %s315 = int_to_ptr.hbm [resolvable:$true] %s314
      %317 = dma.vmem_to_hbm [thread:$0]  %s313, 128, %s315, [#allocation8]
    $region45: #{tpu_custom_call.1} parent=1 // pred_fallthru
      _
    // Predicated region
    $region46: #{tpu_custom_call.1} parent=1 // pred_check
      _
    $region47: #{tpu_custom_call.1} parent=1 // pred_check_branch
      %319 = sbr.rel (0) target = $region49
    $region48: #{tpu_custom_call.1} parent=1 // pred_region
      %321 = vsyncadd [#allocation13], 0
      %s323 = sshll.u32 [#allocation12], 4
      %s324 = int_to_ptr.vmem [resolvable:$true] %s323
      %s325 = sshll.u32 %s7, 4
      %s326 = int_to_ptr.hbm [resolvable:$true] %s325
      %328 = dma.vmem_to_hbm [thread:$0]  %s324, 128, %s326, [#allocation13]
    $region49: #{tpu_custom_call.1} parent=1 // pred_fallthru
      _
    // Predicated region
    $region50: #{tpu_custom_call.1} parent=1 // pred_check
      _
    $region51: #{tpu_custom_call.1} parent=1 // pred_check_branch
      %330 = sbr.rel (0) target = $region53
    $region52: #{tpu_custom_call.1} parent=1 // pred_region
      %332 = vsyncadd [#allocation13], 0
      %s334 = sshll.u32 [#allocation14], 4
      %s335 = int_to_ptr.vmem [resolvable:$true] %s334
      %s336 = sshll.u32 %s8, 4
      %s337 = int_to_ptr.hbm [resolvable:$true] %s336
      %339 = dma.vmem_to_hbm [thread:$0]  %s335, 128, %s337, [#allocation13]
    $region53: #{tpu_custom_call.1} parent=1 // pred_fallthru
      _
    // Predicated region
    $region54: #{tpu_custom_call.1} parent=1 // pred_check
      _
    $region55: #{tpu_custom_call.1} parent=1 // pred_check_branch
      %341 = sbr.rel (0) target = $region57
    $region56: #{tpu_custom_call.1} parent=1 // pred_region
      %343 = dma.done [#allocation8], 128
    $region57: #{tpu_custom_call.1} parent=1 // pred_fallthru
      _
    // Predicated region
    $region58: #{tpu_custom_call.1} parent=1 // pred_check
      _
    $region59: #{tpu_custom_call.1} parent=1 // pred_check_branch
      %345 = sbr.rel (0) target = $region61
    $region60: #{tpu_custom_call.1} parent=1 // pred_region
      %347 = dma.done [#allocation13], 128
    $region61: #{tpu_custom_call.1} parent=1 // pred_fallthru
      _
    // Predicated region
    $region62: #{tpu_custom_call.1} parent=1 // pred_check
      _
    $region63: #{tpu_custom_call.1} parent=1 // pred_check_branch
      %349 = sbr.rel (0) target = $region65
    $region64: #{tpu_custom_call.1} parent=1 // pred_region
      %351 = dma.done [#allocation13], 128
    $region65: #{tpu_custom_call.1} parent=1 // pred_fallthru
      _
    %352 = vsyncpa [#allocation7], 1
    %353 = vsyncpa [#allocation10], 1
    %354 = vsyncpa [#allocation8], 1
    %355 = vsyncpa [#allocation13], 1

</llo_original>
